<compile_context>
chip_gen: v5e
topology: v5e:2x2
jax: 0.10.0
libtpu: 0.0.40
codegen_flags: <defaults>
</compile_context>

<pallas_src>
import functools

import jax
import jax.numpy as jnp
from jax.experimental import pallas as pl
from jax.experimental.pallas import tpu as pltpu

_LANES = 512          # lane-dense last dim (multiple of 128) -> unmasked stores
_MAX_TILE_ROWS = 1024 # (1024, 512) f32 tile = 2 MiB/buffer; 2 bufs x (in + out)
                      # = 8 MiB resident: safe on v5e/v6e/v7x scoped VMEM.


def _scaler_kernel(x_ref, o_ref, *, rate):
    # Divide in the input dtype, exactly matching PyTorch `input / self.rate`.
    # Bandwidth-bound kernel: the VPU divide is hidden under the HBM DMA.
    o_ref[...] = x_ref[...] / jnp.asarray(rate, dtype=x_ref.dtype)


def scaler_forward(x, rate, training=True):
    """Pallas equivalent of Scaler.forward.

    Args:
      x: any-shaped float array (e.g. NCHW activations).
      rate: python scalar, the divisor used during training.
      training: if False, behaves as identity (matches nn.Module eval mode).
    """
    if not training:
        # Eval mode is a pure identity in the reference module; no compute.
        return x

    # TODO(synk): integer inputs would need torch-style true-divide promotion;
    # the reference module only ever sees float activations.
    orig_shape = x.shape
    total = x.size
    if total == 0:
        return x

    x1d = x.reshape(-1)

    # Pad the flat length up to a multiple of _LANES so the 2-D slab has a
    # lane-dense last dim.  In the common case (element count already a
    # multiple of 512) this is a no-op and no copy is made.
    pad = (-total) % _LANES
    if pad:
        x1d = jnp.pad(x1d, (0, pad))
    rows = (total + pad) // _LANES
    x2d = x1d.reshape(rows, _LANES)

    # Row tile: full extent for small inputs (single grid step, any row count
    # is legal when the block equals the full array dim), otherwise 1024-row
    # tiles with a ragged last block handled by Pallas masking.
    tile_rows = rows if rows <= _MAX_TILE_ROWS else _MAX_TILE_ROWS
    grid = (pl.cdiv(rows, tile_rows),)

    kernel = functools.partial(_scaler_kernel, rate=float(rate))

    out2d = pl.pallas_call(
        kernel,
        out_shape=jax.ShapeDtypeStruct((rows, _LANES), x.dtype),
        grid=grid,
        in_specs=[pl.BlockSpec((tile_rows, _LANES), lambda i: (i, 0))],
        out_specs=pl.BlockSpec((tile_rows, _LANES), lambda i: (i, 0)),
        compiler_params=pltpu.CompilerParams(
            # 'parallel' lets v7x shard the row-tile loop over its 2 TCs;
            # neutral on single-TC v5e/v6e.
            dimension_semantics=("parallel",),
        ),
    )(x2d)

    out1d = out2d.reshape(-1)
    if pad:
        out1d = out1d[:total]
    return out1d.reshape(orig_shape)


if __name__ == "__main__":
    key = jax.random.PRNGKey(0)
    # Small NCHW input consistent with typical usage of Scaler on activations.
    x = jax.random.normal(key, (2, 4, 16, 16), dtype=jnp.float32)
    rate = 0.5  # e.g. a dropout-style keep rate

    # Training path (the actual kernel; 2048 elems -> (4, 512) slab, 1 step).
    y_train = jax.block_until_ready(scaler_forward(x, rate, training=True))

    # Eval path (identity, no kernel).
    y_eval = jax.block_until_ready(scaler_forward(x, rate, training=False))

    assert jnp.allclose(y_train, x / rate, atol=1e-6, rtol=1e-6)
    assert jnp.array_equal(y_eval, x)

    # Exercise the padded + multi-tile (ragged last block) path:
    # 2*4*256*257 = 526336 elems -> 1028 rows -> 2 grid steps of 1024 rows.
    x_big = jax.random.normal(jax.random.PRNGKey(1), (2, 4, 256, 257),
                              dtype=jnp.float32)
    y_big = jax.block_until_ready(scaler_forward(x_big, 3.0, training=True))
    assert jnp.allclose(y_big, x_big / 3.0, atol=1e-6, rtol=1e-6)

    # Exercise the tail-padding path (size not a multiple of 512).
    x_odd = jax.random.normal(jax.random.PRNGKey(2), (3, 7, 33, 65),
                              dtype=jnp.float32)
    y_odd = jax.block_until_ready(scaler_forward(x_odd, 2.0, training=True))
    assert jnp.allclose(y_odd, x_odd / 2.0, atol=1e-6, rtol=1e-6)

    print("KERNEL_OK")
</pallas_src>

<mosaic_0001>
module attributes {stable_mosaic.version = 11 : i64} {
  func.func @_scaler_kernel(%arg0: i32, %arg1: memref<4x512xf32, #tpu.memory_space<vmem>>, %arg2: memref<4x512xf32, #tpu.memory_space<vmem>>) attributes {dimension_semantics = [#tpu.dimension_semantics<parallel>], iteration_bounds = array<i64: 1>, scalar_prefetch = 0 : i64, scratch_operands = 0 : i64, tpu.core_type = #tpu.core_type<tc>, window_params = [{transform_indices = @transform_0, window_bounds = array<i64: 4, 512>}, {transform_indices = @transform_1, window_bounds = array<i64: 4, 512>}]} {
    %c0 = arith.constant 0 : index
    %c0_0 = arith.constant 0 : index
    %0 = vector.load %arg1[%c0, %c0_0] : memref<4x512xf32, #tpu.memory_space<vmem>>, vector<4x512xf32>
    %cst = arith.constant 5.000000e-01 : f32
    %1 = vector.broadcast %cst : f32 to vector<4x512xf32>
    %2 = arith.divf %0, %1 : vector<4x512xf32>
    %c0_1 = arith.constant 0 : index
    %c0_2 = arith.constant 0 : index
    %3 = vector.load %arg2[%c0_1, %c0_2] : memref<4x512xf32, #tpu.memory_space<vmem>>, vector<4x512xf32>
    tpu.vector_store %arg2[%c0_1, %c0_2], %2 {strides = array<i32>} : memref<4x512xf32, #tpu.memory_space<vmem>>, vector<4x512xf32>,
    return
  }
  func.func @transform_0(%arg0: i32) -> (i32, i32) {
    %c0_i32 = arith.constant 0 : i32
    %c0_i32_0 = arith.constant 0 : i32
    return %arg0, %c0_i32 : i32, i32
  }
  func.func @transform_1(%arg0: i32) -> (i32, i32) {
    %c0_i32 = arith.constant 0 : i32
    %c0_i32_0 = arith.constant 0 : i32
    return %arg0, %c0_i32 : i32, i32
  }
}

</mosaic_0001>

<llo_original>
// kernel: tpu_custom_call.1
$region0: #{tpu_custom_call.1}
  #allocation0 [shape = 'u32[]', space=smem, size = 0x4, offset = 0x4, fixed_abs, tag = 'smem constant byte address 0x4 - core index']
  #allocation1 [shape = 'u32[72,128]{1,0:T(1,128)}', space=vmem, size = 0x9000, scoped, tag = 'internal scratch']
  %s0 = inlined_call_operand.hbm [shape: f32[4,512], index: 0, kind: input, shape index: {}]
  %s1 = inlined_call_operand.hbm [shape: f32[4,512], index: 1, kind: output, shape index: {}]
  %s2 = sld [smem:[#allocation0]]
  $region18: #{tpu_custom_call.1} parent=0
    _
  %s4 = ssub.s32 1, %s2
  %s5 = scalar_select 0, %s4, %s2
  $region1: #{tpu_custom_call.1} parent=0
    #allocation2 [shape = 'u8[8192]{0}', space=vmem, size = 0x2000, scoped, tag = 'input window, operand 0, single buffered']
    #allocation3 [shape = 's32[1]{0}', space=sflag, size = 0x4, scoped, tag = 'scoped memory for tpu_custom_call.1']
    #allocation4 [shape = 's32[1]{0}', space=sflag, size = 0x4, scoped, tag = 'scoped memory for tpu_custom_call.1']
    #allocation5 [shape = 'u8[8192]{0}', space=vmem, size = 0x2000, scoped, tag = 'output window, operand 0, single buffered']
    %6 = vsyncpa [#allocation3], 0
    %7 = vsyncpa [#allocation4], 0
    // Predicated region
    $region2: #{tpu_custom_call.1} parent=1 // pred_check
      _
    $region3: #{tpu_custom_call.1} parent=1 // pred_check_branch
      %9 = sbr.rel (0) target = $region5
    $region4: #{tpu_custom_call.1} parent=1 // pred_region
      %11 = vsyncadd [#allocation3], 0
      %s13 = sshll.u32 %s0, 4
      %s14 = int_to_ptr.hbm [resolvable:$true] %s13
      %s15 = sshll.u32 [#allocation2], 4
      %s16 = int_to_ptr.vmem [resolvable:$true] %s15
      %18 = dma.hbm_to_vmem [thread:$0]  %s14, 256, %s16, [#allocation3]
    $region5: #{tpu_custom_call.1} parent=1 // pred_fallthru
      _
    // Predicated region
    $region6: #{tpu_custom_call.1} parent=1 // pred_check
      _
    $region7: #{tpu_custom_call.1} parent=1 // pred_check_branch
      %20 = sbr.rel (0) target = $region9
    $region8: #{tpu_custom_call.1} parent=1 // pred_region
      %22 = dma.done [#allocation3], 256
    $region9: #{tpu_custom_call.1} parent=1 // pred_fallthru
      _
    %v23 = vld [vmem:[#allocation2] sm:$0xff]
    %v24 = vld [vmem:[#allocation2 + $0x8] sm:$0xff]
    %v25 = vrcp.pop 0.5
    %v26 = vmul.f32 0.5, %v25
    %v27 = vsub.f32 1.0, %v26
    %v28 = vmul.f32 %v25, %v27
    %v29 = vadd.f32 %v25, %v28
    %vm30 = vweird.f32 %v25
    %v31 = vsel %vm30, %v25, %v29
    %v32 = vmul.f32 %v23, %v31
    %v33 = vmul.f32 %v24, %v31
    %34 = vst [vmem:[#allocation5] sm:$0xff] %v32
    %35 = vst [vmem:[#allocation5 + $0x8] sm:$0xff] %v33
    // Predicated region
    $region10: #{tpu_custom_call.1} parent=1 // pred_check
      _
    $region11: #{tpu_custom_call.1} parent=1 // pred_check_branch
      %37 = sbr.rel (0) target = $region13
    $region12: #{tpu_custom_call.1} parent=1 // pred_region
      %39 = vsyncadd [#allocation4], 0
      %s41 = sshll.u32 [#allocation5], 4
      %s42 = int_to_ptr.vmem [resolvable:$true] %s41
      %s43 = sshll.u32 %s1, 4
      %s44 = int_to_ptr.hbm [resolvable:$true] %s43
      %46 = dma.vmem_to_hbm [thread:$0]  %s42, 256, %s44, [#allocation4]
    $region13: #{tpu_custom_call.1} parent=1 // pred_fallthru
      _
    // Predicated region
    $region14: #{tpu_custom_call.1} parent=1 // pred_check
      _
    $region15: #{tpu_custom_call.1} parent=1 // pred_check_branch
      %48 = sbr.rel (0) target = $region17
    $region16: #{tpu_custom_call.1} parent=1 // pred_region
      %50 = dma.done [#allocation4], 256
    $region17: #{tpu_custom_call.1} parent=1 // pred_fallthru
      _
    %51 = vsyncpa [#allocation3], 1
    %52 = vsyncpa [#allocation4], 1

</llo_original>
